<compile_context>
chip_gen: v7x
topology: tpu7x:2x2x1
jax: 0.10.0
libtpu: 0.0.40
codegen_flags: <defaults>
</compile_context>

<pallas_src>
import functools

import jax
import jax.numpy as jnp
from jax.experimental import pallas as pl
from jax.experimental.pallas import tpu as pltpu


def vae_fwd_kernel(
    x_ref, eps_ref,                   # batch-tiled inputs
    we_ref, be_ref,                   # fused encoder  [in_dim, 2*emb_dim], [1, 2*emb_dim]
    wd_ref, bd_ref,                   # decoder        [emb_dim, in_dim],   [1, in_dim]
    mean_ref, std_ref, z_ref, xrec_ref,   # batch-tiled outputs (lane-native widths)
    *, emb_dim, use_bf16_matmul,
):
    x = x_ref[...]                                        # [TB, in_dim] f32
    we = we_ref[...]
    wd = wd_ref[...]

    if use_bf16_matmul:
        # bf16 only at MXU inputs; accumulation + all elementwise math stay f32.
        x_mm, we = x.astype(jnp.bfloat16), we.astype(jnp.bfloat16)
    else:
        x_mm = x

    # fused encoder heads: one MXU matmul producing [TB, 2*emb_dim]
    enc = jnp.dot(x_mm, we, preferred_element_type=jnp.float32) + be_ref[...]
    mean = enc[:, :emb_dim]
    logvar = enc[:, emb_dim:]

    # std = softplus(logvar)   (stable form; exp/log1p land on the EUP slot)
    std = jnp.log1p(jnp.exp(-jnp.abs(logvar))) + jnp.maximum(logvar, 0.0)

    # reparametrization: z = mean + std * eps   (all f32 on the VPU)
    z = mean + std * eps_ref[...]

    # decoder: x_ = z @ W_dec + b_dec
    if use_bf16_matmul:
        z_mm, wd = z.astype(jnp.bfloat16), wd.astype(jnp.bfloat16)
    else:
        z_mm = z
    xrec = jnp.dot(z_mm, wd, preferred_element_type=jnp.float32) + bd_ref[...]

    # separate lane-native stores (no packing / padding / wrapper re-slicing)
    mean_ref[...] = mean
    std_ref[...] = std
    z_ref[...] = z
    xrec_ref[...] = xrec


def _pick_batch_tile(B, cap=512):
    """Largest divisor of B that is <= cap.

    Caps the per-step VMEM footprint and gives the grid multiple iterations for
    large B, so the BlockSpec pipeline actually overlaps DMA with compute and
    (on v7x) the "parallel" batch axis can shard across both TensorCores.
    """
    bt = min(B, cap)
    while B % bt != 0:
        bt -= 1
    return bt


def _vmem_limit_bytes(batch_tile, in_dim, emb_dim, dsize=4):
    """Explicit scoped-VMEM budget: double-buffered tiles + resident weights."""
    per_tile = batch_tile * (in_dim + emb_dim           # x, eps
                             + 3 * emb_dim + in_dim)    # mean, std, z, xrec
    resident = in_dim * 2 * emb_dim + 2 * emb_dim + emb_dim * in_dim + in_dim
    need = (2 * per_tile + 2 * resident) * dsize        # 2x for double-buffering
    # 2x headroom, floor 4 MiB, cap below v7x's 64 MiB physical VMEM.
    return int(min(max(2 * need, 4 << 20), 48 << 20))


def fuse_encoder_params(params):
    """One-time preprocessing: fuse the two encoder heads into one matmul.

    Call this once (at init / param-load time), NOT inside the per-step forward,
    so the full-matrix concat copy is off the hot path.
    """
    return {
        "w_enc": jnp.concatenate([params["w_mean"], params["w_logvar"]], axis=1),
        "b_enc": jnp.concatenate([params["b_mean"], params["b_logvar"]], axis=1),
        "w_dec": params["w_dec"],
        "b_dec": params["b_dec"],
    }


def vae_forward(x, eps, fused_params, *, batch_tile=None, use_bf16_matmul=False):
    """Runs the fused VAE forward. Returns (mean, std, z, x_rec)."""
    B, in_dim = x.shape
    emb_dim = eps.shape[1]
    assert fused_params["w_enc"].shape == (in_dim, 2 * emb_dim)
    assert fused_params["w_dec"].shape == (emb_dim, in_dim)

    if batch_tile is None:
        # Cap the tile so large batches get several pipelined grid steps.
        # (On v7x, passing batch_tile = B // 2 explicitly for small B keeps
        #  both TensorCores busy; for large B the cap already yields >= 2 steps.)
        batch_tile = _pick_batch_tile(B)
    assert B % batch_tile == 0

    bt = lambda d: pl.BlockSpec((batch_tile, d), lambda i: (i, 0))        # batch-tiled
    full = lambda r, c: pl.BlockSpec((r, c), lambda i: (0, 0))            # grid-invariant

    kernel = functools.partial(
        vae_fwd_kernel, emb_dim=emb_dim, use_bf16_matmul=use_bf16_matmul)

    mean, std, z, xrec = pl.pallas_call(
        kernel,
        out_shape=(
            jax.ShapeDtypeStruct((B, emb_dim), jnp.float32),   # mean
            jax.ShapeDtypeStruct((B, emb_dim), jnp.float32),   # std
            jax.ShapeDtypeStruct((B, emb_dim), jnp.float32),   # z
            jax.ShapeDtypeStruct((B, in_dim), jnp.float32),    # x_rec
        ),
        grid_spec=pltpu.PrefetchScalarGridSpec(
            num_scalar_prefetch=0,
            grid=(B // batch_tile,),
            in_specs=[
                bt(in_dim),                       # x
                bt(emb_dim),                      # eps
                full(in_dim, 2 * emb_dim),        # w_enc (mean|logvar fused)
                full(1, 2 * emb_dim),             # b_enc
                full(emb_dim, in_dim),            # w_dec
                full(1, in_dim),                  # b_dec
            ],
            out_specs=[
                bt(emb_dim), bt(emb_dim), bt(emb_dim), bt(in_dim),
            ],
        ),
        compiler_params=pltpu.CompilerParams(
            dimension_semantics=("parallel",),
            vmem_limit_bytes=_vmem_limit_bytes(batch_tile, in_dim, emb_dim),
        ),
    )(x, eps, fused_params["w_enc"], fused_params["b_enc"],
      fused_params["w_dec"], fused_params["b_dec"])

    return mean, std, z, xrec


def init_params(key, in_dim, emb_dim):
    ks = jax.random.split(key, 6)
    scale_in = 1.0 / jnp.sqrt(in_dim)
    scale_emb = 1.0 / jnp.sqrt(emb_dim)
    return {
        "w_mean":   jax.random.uniform(ks[0], (in_dim, emb_dim), jnp.float32, -scale_in, scale_in),
        "b_mean":   jax.random.uniform(ks[1], (1, emb_dim), jnp.float32, -scale_in, scale_in),
        "w_logvar": jax.random.uniform(ks[2], (in_dim, emb_dim), jnp.float32, -scale_in, scale_in),
        "b_logvar": jax.random.uniform(ks[3], (1, emb_dim), jnp.float32, -scale_in, scale_in),
        "w_dec":    jax.random.uniform(ks[4], (emb_dim, in_dim), jnp.float32, -scale_emb, scale_emb),
        "b_dec":    jax.random.uniform(ks[5], (1, in_dim), jnp.float32, -scale_emb, scale_emb),
    }


def vae_forward_ref(x, eps, p):
    mean = x @ p["w_mean"] + p["b_mean"]
    logvar = x @ p["w_logvar"] + p["b_logvar"]
    std = jax.nn.softplus(logvar)
    z = mean + std * eps
    xrec = z @ p["w_dec"] + p["b_dec"]
    return mean, std, z, xrec


if __name__ == "__main__":
    key = jax.random.PRNGKey(0)
    B, in_dim, emb_dim = 16, 32, 16     # small shapes consistent with the module

    k_x, k_eps, k_p = jax.random.split(key, 3)
    x = jax.random.normal(k_x, (B, in_dim), dtype=jnp.float32)
    eps = jax.random.normal(k_eps, (B, emb_dim), dtype=jnp.float32)  # rsample noise
    params = init_params(k_p, in_dim, emb_dim)

    # One-time preprocessing (hoisted out of the per-call forward path).
    fused = fuse_encoder_params(params)

    mean, std, z, x_rec = jax.block_until_ready(vae_forward(x, eps, fused))

    # sanity check against the plain-JAX reference
    r_mean, r_std, r_z, r_xrec = vae_forward_ref(x, eps, params)
    assert jnp.allclose(mean, r_mean, atol=1e-5)
    assert jnp.allclose(std, r_std, atol=1e-5)
    assert jnp.allclose(z, r_z, atol=1e-5)
    assert jnp.allclose(x_rec, r_xrec, atol=1e-5)
    assert x_rec.shape == x.shape and z.shape == (B, emb_dim)

    print("KERNEL_OK")
</pallas_src>

<mosaic_0001>
module attributes {stable_mosaic.version = 11 : i64} {
  func.func @vae_fwd_kernel(%arg0: i32, %arg1: memref<16x32xf32, #tpu.memory_space<vmem>>, %arg2: memref<16x16xf32, #tpu.memory_space<vmem>>, %arg3: memref<32x32xf32, #tpu.memory_space<vmem>>, %arg4: memref<1x32xf32, #tpu.memory_space<vmem>>, %arg5: memref<16x32xf32, #tpu.memory_space<vmem>>, %arg6: memref<1x32xf32, #tpu.memory_space<vmem>>, %arg7: memref<16x16xf32, #tpu.memory_space<vmem>>, %arg8: memref<16x16xf32, #tpu.memory_space<vmem>>, %arg9: memref<16x16xf32, #tpu.memory_space<vmem>>, %arg10: memref<16x32xf32, #tpu.memory_space<vmem>>) attributes {dimension_semantics = [#tpu.dimension_semantics<parallel>], iteration_bounds = array<i64: 1>, scalar_prefetch = 0 : i64, scratch_operands = 0 : i64, tpu.core_type = #tpu.core_type<tc>, window_params = [{transform_indices = @transform_0, window_bounds = array<i64: 16, 32>}, {transform_indices = @transform_1, window_bounds = array<i64: 16, 16>}, {pipeline_mode = #tpu.pipeline_mode<synchronous>, transform_indices = @transform_2, window_bounds = array<i64: 32, 32>}, {pipeline_mode = #tpu.pipeline_mode<synchronous>, transform_indices = @transform_3, window_bounds = array<i64: 1, 32>}, {pipeline_mode = #tpu.pipeline_mode<synchronous>, transform_indices = @transform_4, window_bounds = array<i64: 16, 32>}, {pipeline_mode = #tpu.pipeline_mode<synchronous>, transform_indices = @transform_5, window_bounds = array<i64: 1, 32>}, {transform_indices = @transform_6, window_bounds = array<i64: 16, 16>}, {transform_indices = @transform_7, window_bounds = array<i64: 16, 16>}, {transform_indices = @transform_8, window_bounds = array<i64: 16, 16>}, {transform_indices = @transform_9, window_bounds = array<i64: 16, 32>}]} {
    %c0 = arith.constant 0 : index
    %c0_0 = arith.constant 0 : index
    %0 = vector.load %arg1[%c0, %c0_0] : memref<16x32xf32, #tpu.memory_space<vmem>>, vector<16x32xf32>
    %c0_1 = arith.constant 0 : index
    %c0_2 = arith.constant 0 : index
    %1 = vector.load %arg3[%c0_1, %c0_2] : memref<32x32xf32, #tpu.memory_space<vmem>>, vector<32x32xf32>
    %c0_3 = arith.constant 0 : index
    %c0_4 = arith.constant 0 : index
    %2 = vector.load %arg5[%c0_3, %c0_4] : memref<16x32xf32, #tpu.memory_space<vmem>>, vector<16x32xf32>
    %cst = arith.constant dense<0.000000e+00> : vector<16x32xf32>
    %3 = tpu.matmul %0, %1, %cst {dimension_numbers = #tpu.dot_dimension_numbers<[1], [0], [0], [1], [0, 0, 1, 1], [], []>} : vector<16x32xf32>, vector<32x32xf32>, vector<16x32xf32> -> vector<16x32xf32>
    %c0_5 = arith.constant 0 : index
    %c0_6 = arith.constant 0 : index
    %4 = vector.load %arg4[%c0_5, %c0_6] : memref<1x32xf32, #tpu.memory_space<vmem>>, vector<1x32xf32>
    %5 = vector.broadcast %4 : vector<1x32xf32> to vector<16x32xf32>
    %6 = arith.addf %3, %5 : vector<16x32xf32>
    %7 = vector.extract_strided_slice %6 {offsets = [0, 0], sizes = [16, 16], strides = [1, 1]} : vector<16x32xf32> to vector<16x16xf32>
    %8 = vector.extract_strided_slice %6 {offsets = [0, 16], sizes = [16, 16], strides = [1, 1]} : vector<16x32xf32> to vector<16x16xf32>
    %9 = math.absf %8 : vector<16x16xf32>
    %cst_7 = arith.constant 0.000000e+00 : f32
    %10 = vector.broadcast %cst_7 : f32 to vector<16x16xf32>
    %11 = arith.subf %10, %9 : vector<16x16xf32>
    %12 = math.exp %11 : vector<16x16xf32>
    %13 = math.log1p %12 : vector<16x16xf32>
    %cst_8 = arith.constant 0.000000e+00 : f32
    %14 = vector.broadcast %cst_8 : f32 to vector<16x16xf32>
    %15 = arith.maximumf %8, %14 : vector<16x16xf32>
    %16 = arith.addf %13, %15 : vector<16x16xf32>
    %c0_9 = arith.constant 0 : index
    %c0_10 = arith.constant 0 : index
    %17 = vector.load %arg2[%c0_9, %c0_10] : memref<16x16xf32, #tpu.memory_space<vmem>>, vector<16x16xf32>
    %18 = arith.mulf %16, %17 : vector<16x16xf32>
    %19 = arith.addf %7, %18 : vector<16x16xf32>
    %cst_11 = arith.constant dense<0.000000e+00> : vector<16x32xf32>
    %20 = tpu.matmul %19, %2, %cst_11 {dimension_numbers = #tpu.dot_dimension_numbers<[1], [0], [0], [1], [0, 0, 1, 1], [], []>} : vector<16x16xf32>, vector<16x32xf32>, vector<16x32xf32> -> vector<16x32xf32>
    %c0_12 = arith.constant 0 : index
    %c0_13 = arith.constant 0 : index
    %21 = vector.load %arg6[%c0_12, %c0_13] : memref<1x32xf32, #tpu.memory_space<vmem>>, vector<1x32xf32>
    %22 = vector.broadcast %21 : vector<1x32xf32> to vector<16x32xf32>
    %23 = arith.addf %20, %22 : vector<16x32xf32>
    %c0_14 = arith.constant 0 : index
    %c0_15 = arith.constant 0 : index
    %24 = vector.load %arg7[%c0_14, %c0_15] : memref<16x16xf32, #tpu.memory_space<vmem>>, vector<16x16xf32>
    tpu.vector_store %arg7[%c0_14, %c0_15], %7 {strides = array<i32>} : memref<16x16xf32, #tpu.memory_space<vmem>>, vector<16x16xf32>,
    %c0_16 = arith.constant 0 : index
    %c0_17 = arith.constant 0 : index
    %25 = vector.load %arg8[%c0_16, %c0_17] : memref<16x16xf32, #tpu.memory_space<vmem>>, vector<16x16xf32>
    tpu.vector_store %arg8[%c0_16, %c0_17], %16 {strides = array<i32>} : memref<16x16xf32, #tpu.memory_space<vmem>>, vector<16x16xf32>,
    %c0_18 = arith.constant 0 : index
    %c0_19 = arith.constant 0 : index
    %26 = vector.load %arg9[%c0_18, %c0_19] : memref<16x16xf32, #tpu.memory_space<vmem>>, vector<16x16xf32>
    tpu.vector_store %arg9[%c0_18, %c0_19], %19 {strides = array<i32>} : memref<16x16xf32, #tpu.memory_space<vmem>>, vector<16x16xf32>,
    %c0_20 = arith.constant 0 : index
    %c0_21 = arith.constant 0 : index
    %27 = vector.load %arg10[%c0_20, %c0_21] : memref<16x32xf32, #tpu.memory_space<vmem>>, vector<16x32xf32>
    tpu.vector_store %arg10[%c0_20, %c0_21], %23 {strides = array<i32>} : memref<16x32xf32, #tpu.memory_space<vmem>>, vector<16x32xf32>,
    return
  }
  func.func @transform_0(%arg0: i32) -> (i32, i32) {
    %c0_i32 = arith.constant 0 : i32
    %c0_i32_0 = arith.constant 0 : i32
    return %arg0, %c0_i32 : i32, i32
  }
  func.func @transform_1(%arg0: i32) -> (i32, i32) {
    %c0_i32 = arith.constant 0 : i32
    %c0_i32_0 = arith.constant 0 : i32
    return %arg0, %c0_i32 : i32, i32
  }
  func.func @transform_2(%arg0: i32) -> (i32, i32) {
    %c0_i32 = arith.constant 0 : i32
    %c0_i32_0 = arith.constant 0 : i32
    %c0_i32_1 = arith.constant 0 : i32
    return %c0_i32, %c0_i32_0 : i32, i32
  }
  func.func @transform_3(%arg0: i32) -> (i32, i32) {
    %c0_i32 = arith.constant 0 : i32
    %c0_i32_0 = arith.constant 0 : i32
    %c0_i32_1 = arith.constant 0 : i32
    return %c0_i32, %c0_i32_0 : i32, i32
  }
  func.func @transform_4(%arg0: i32) -> (i32, i32) {
    %c0_i32 = arith.constant 0 : i32
    %c0_i32_0 = arith.constant 0 : i32
    %c0_i32_1 = arith.constant 0 : i32
    return %c0_i32, %c0_i32_0 : i32, i32
  }
  func.func @transform_5(%arg0: i32) -> (i32, i32) {
    %c0_i32 = arith.constant 0 : i32
    %c0_i32_0 = arith.constant 0 : i32
    %c0_i32_1 = arith.constant 0 : i32
    return %c0_i32, %c0_i32_0 : i32, i32
  }
  func.func @transform_6(%arg0: i32) -> (i32, i32) {
    %c0_i32 = arith.constant 0 : i32
    %c0_i32_0 = arith.constant 0 : i32
    return %arg0, %c0_i32 : i32, i32
  }
  func.func @transform_7(%arg0: i32) -> (i32, i32) {
    %c0_i32 = arith.constant 0 : i32
    %c0_i32_0 = arith.constant 0 : i32
    return %arg0, %c0_i32 : i32, i32
  }
  func.func @transform_8(%arg0: i32) -> (i32, i32) {
    %c0_i32 = arith.constant 0 : i32
    %c0_i32_0 = arith.constant 0 : i32
    return %arg0, %c0_i32 : i32, i32
  }
  func.func @transform_9(%arg0: i32) -> (i32, i32) {
    %c0_i32 = arith.constant 0 : i32
    %c0_i32_0 = arith.constant 0 : i32
    return %arg0, %c0_i32 : i32, i32
  }
}

</mosaic_0001>

<llo_original>
// kernel: tpu_custom_call.1
$region0: #{tpu_custom_call.1}
  #allocation0 [shape = 'u32[]', space=smem, size = 0x4, offset = 0x4, fixed_abs, tag = 'smem constant byte address 0x4 - core index']
  #allocation1 [shape = 'u32[144,128]{1,0:T(1,128)}', space=vmem, size = 0x12000, scoped, tag = 'internal scratch']
  %s0 = inlined_call_operand.hbm [shape: f32[16,32], index: 0, kind: input, shape index: {}]
  %s1 = inlined_call_operand.hbm [shape: f32[16,16], index: 1, kind: input, shape index: {}]
  %s2 = inlined_call_operand.hbm [shape: f32[32,32], index: 2, kind: input, shape index: {}]
  %s3 = inlined_call_operand.vmem [shape: f32[1,32], index: 3, kind: input, shape index: {}]
  %s4 = inlined_call_operand.hbm [shape: f32[16,32], index: 4, kind: input, shape index: {}]
  %s5 = inlined_call_operand.vmem [shape: f32[1,32], index: 5, kind: input, shape index: {}]
  %s6 = inlined_call_operand.hbm [shape: f32[16,16], index: 6, kind: output, shape index: {0}]
  %s7 = inlined_call_operand.hbm [shape: f32[16,16], index: 7, kind: output, shape index: {1}]
  %s8 = inlined_call_operand.hbm [shape: f32[16,16], index: 8, kind: output, shape index: {2}]
  %s9 = inlined_call_operand.hbm [shape: f32[16,32], index: 9, kind: output, shape index: {3}]
  %10 = xla_tuple %s6, %s7, %s8, %s9
  %s11 = sld [smem:[#allocation0]]
  $region74: #{tpu_custom_call.1} parent=0
    _
  %s13 = ssub.s32 1, %s11
  %s14 = scalar_select 0, %s13, %s11
  $region1: #{tpu_custom_call.1} parent=0
    #allocation2 [shape = 'u8[8192]{0}', space=vmem, size = 0x2000, scoped, tag = 'input window, operand 0, single buffered']
    #allocation3 [shape = 's32[1]{0}', space=sflag, size = 0x4, scoped, tag = 'scoped memory for tpu_custom_call.1']
    #allocation4 [shape = 's32[1]{0}', space=sflag, size = 0x4, scoped, tag = 'scoped memory for tpu_custom_call.1']
    #allocation5 [shape = 'u8[8192]{0}', space=vmem, size = 0x2000, scoped, tag = 'input window, operand 1, single buffered']
    #allocation6 [shape = 's32[1]{0}', space=sflag, size = 0x4, scoped, tag = 'scoped memory for tpu_custom_call.1']
    #allocation7 [shape = 'u8[16384]{0}', space=vmem, size = 0x4000, scoped, tag = 'input window, operand 2, single buffered']
    #allocation8 [shape = 'u8[8192]{0}', space=vmem, size = 0x2000, scoped, tag = 'input window, operand 4, single buffered']
    #allocation9 [shape = 's32[1]{0}', space=sflag, size = 0x4, scoped, tag = 'scoped memory for tpu_custom_call.1']
    #allocation10 [shape = 'u8[8192]{0}', space=vmem, size = 0x2000, scoped, tag = 'output window, operand 0, single buffered']
    #allocation11 [shape = 'u8[8192]{0}', space=vmem, size = 0x2000, scoped, tag = 'output window, operand 1, single buffered']
    #allocation12 [shape = 's32[1]{0}', space=sflag, size = 0x4, scoped, tag = 'scoped memory for tpu_custom_call.1']
    #allocation13 [shape = 'u8[8192]{0}', space=vmem, size = 0x2000, scoped, tag = 'output window, operand 2, single buffered']
    #allocation14 [shape = 'u8[8192]{0}', space=vmem, size = 0x2000, scoped, tag = 'output window, operand 3, single buffered']
    #allocation15 [shape = 's32[1]{0}', space=sflag, size = 0x4, scoped, tag = 'scoped memory for tpu_custom_call.1']
    %15 = vsyncpa [#allocation3], 0
    %16 = vsyncpa [#allocation6], 0
    %17 = vsyncpa [#allocation9], 0
    %18 = vsyncpa [#allocation4], 0
    %19 = vsyncpa [#allocation12], 0
    %20 = vsyncpa [#allocation15], 0
    // Predicated region
    $region2: #{tpu_custom_call.1} parent=1 // pred_check
      _
    $region3: #{tpu_custom_call.1} parent=1 // pred_check_branch
      %22 = sbr.rel (0) target = $region5
    $region4: #{tpu_custom_call.1} parent=1 // pred_region
      %s24 = ssub.s32 256, 256
      %25 = vsyncadd [#allocation3], %s24
      %s26 = sshll.u32 [#allocation2], 4
      %s27 = int_to_ptr.vmem [resolvable:$true] %s26
      %32 = dma.hbm_to_vmem [thread:$0]  %s0, 256, %s27, [#allocation3], 128, 128, 8
    $region5: #{tpu_custom_call.1} parent=1 // pred_fallthru
      _
    // Predicated region
    $region6: #{tpu_custom_call.1} parent=1 // pred_check
      _
    $region7: #{tpu_custom_call.1} parent=1 // pred_check_branch
      %34 = sbr.rel (0) target = $region9
    $region8: #{tpu_custom_call.1} parent=1 // pred_region
      %s36 = ssub.s32 256, 256
      %37 = vsyncadd [#allocation6], %s36
      %s38 = sshll.u32 [#allocation5], 4
      %s39 = int_to_ptr.vmem [resolvable:$true] %s38
      %44 = dma.hbm_to_vmem [thread:$0]  %s1, 256, %s39, [#allocation6], 128, 128, 8
    $region9: #{tpu_custom_call.1} parent=1 // pred_fallthru
      _
    // Predicated region
    $region10: #{tpu_custom_call.1} parent=1 // pred_check
      _
    $region11: #{tpu_custom_call.1} parent=1 // pred_check_branch
      %46 = sbr.rel (0) target = $region13
    $region12: #{tpu_custom_call.1} parent=1 // pred_region
      %s48 = ssub.s32 512, 512
      %49 = vsyncadd [#allocation6], %s48
      %s50 = sshll.u32 [#allocation7], 4
      %s51 = int_to_ptr.vmem [resolvable:$true] %s50
      %56 = dma.hbm_to_vmem [thread:$0]  %s2, 512, %s51, [#allocation6], 128, 128, 8
    $region13: #{tpu_custom_call.1} parent=1 // pred_fallthru
      _
    // Predicated region
    $region14: #{tpu_custom_call.1} parent=1 // pred_check
      _
    $region15: #{tpu_custom_call.1} parent=1 // pred_check_branch
      %58 = sbr.rel (0) target = $region17
    $region16: #{tpu_custom_call.1} parent=1 // pred_region
      _
    $region17: #{tpu_custom_call.1} parent=1 // pred_fallthru
      _
    // Predicated region
    $region18: #{tpu_custom_call.1} parent=1 // pred_check
      _
    $region19: #{tpu_custom_call.1} parent=1 // pred_check_branch
      %60 = sbr.rel (0) target = $region21
    $region20: #{tpu_custom_call.1} parent=1 // pred_region
      %s62 = ssub.s32 256, 256
      %63 = vsyncadd [#allocation9], %s62
      %s64 = sshll.u32 [#allocation8], 4
      %s65 = int_to_ptr.vmem [resolvable:$true] %s64
      %70 = dma.hbm_to_vmem [thread:$0]  %s4, 256, %s65, [#allocation9], 128, 128, 8
    $region21: #{tpu_custom_call.1} parent=1 // pred_fallthru
      _
    // Predicated region
    $region22: #{tpu_custom_call.1} parent=1 // pred_check
      _
    $region23: #{tpu_custom_call.1} parent=1 // pred_check_branch
      %72 = sbr.rel (0) target = $region25
    $region24: #{tpu_custom_call.1} parent=1 // pred_region
      _
    $region25: #{tpu_custom_call.1} parent=1 // pred_fallthru
      _
    // Predicated region
    $region26: #{tpu_custom_call.1} parent=1 // pred_check
      _
    $region27: #{tpu_custom_call.1} parent=1 // pred_check_branch
      %74 = sbr.rel (0) target = $region29
    $region28: #{tpu_custom_call.1} parent=1 // pred_region
      %75 = dma.done [#allocation3], 256
    $region29: #{tpu_custom_call.1} parent=1 // pred_fallthru
      _
    // Predicated region
    $region30: #{tpu_custom_call.1} parent=1 // pred_check
      _
    $region31: #{tpu_custom_call.1} parent=1 // pred_check_branch
      %77 = sbr.rel (0) target = $region33
    $region32: #{tpu_custom_call.1} parent=1 // pred_region
      %78 = dma.done [#allocation6], 256
    $region33: #{tpu_custom_call.1} parent=1 // pred_fallthru
      _
    // Predicated region
    $region34: #{tpu_custom_call.1} parent=1 // pred_check
      _
    $region35: #{tpu_custom_call.1} parent=1 // pred_check_branch
      %80 = sbr.rel (0) target = $region37
    $region36: #{tpu_custom_call.1} parent=1 // pred_region
      %81 = dma.done [#allocation6], 512
    $region37: #{tpu_custom_call.1} parent=1 // pred_fallthru
      _
    // Predicated region
    $region38: #{tpu_custom_call.1} parent=1 // pred_check
      _
    $region39: #{tpu_custom_call.1} parent=1 // pred_check_branch
      %83 = sbr.rel (0) target = $region41
    $region40: #{tpu_custom_call.1} parent=1 // pred_region
      %84 = dma.done [#allocation9], 256
    $region41: #{tpu_custom_call.1} parent=1 // pred_fallthru
      _
    %v85 = vld [vmem:[#allocation2] sm:$0xff]
    %v86 = vld [vmem:[#allocation2 + $0x8] sm:$0xff]
    %v87 = vld [vmem:[#allocation7] sm:$0xff]
    %v88 = vld [vmem:[#allocation7 + $0x8] sm:$0xff]
    %v89 = vld [vmem:[#allocation7 + $0x10] sm:$0xff]
    %v90 = vld [vmem:[#allocation7 + $0x18] sm:$0xff]
    %v91 = vld [vmem:[#allocation8] sm:$0xff]
    %v92 = vld [vmem:[#allocation8 + $0x8] sm:$0xff]
    %v93 = vld [vmem:[%s3] sm:$0x1]
    %v95 = vlaneseq
    %v96 = vshrl.u32 %v95, 7
    %v97 = vsub.s32 0, %v96
    %v98 = vrot.slane %v93, %v97
    %vm100 = vcmask 261120
    %v102 = vsel %vm100, %v85, 0
    %v105 = vsel %vm100, %v86, 0
    %107 = vmatprep.subr.mxu0 0.0
    %108 = vmatpush1.msra.mxu0 %v87
    %109 = vmatprep.subr.mxu0 0.0
    %110 = vmatpush1.msra.mxu0 %v88
    %111 = vmatprep.subr.mxu0 0.0
    %112 = vmatpush1.msra.mxu0 %v89
    %113 = vmatprep.subr.mxu0 0.0
    %114 = vmatpush1.msra.mxu0 %v90
    %115 = vmatprep.subr.mxu0 0.0
    %116 = vmatpush1.msra.mxu0 0.0
    %117 = vmatprep.subr.mxu0 0.0
    %118 = vmatpush1.msra.mxu0 0.0
    %119 = vmatprep.subr.mxu0 0.0
    %120 = vmatpush1.msra.mxu0 0.0
    %121 = vmatprep.subr.mxu0 0.0
    %122 = vmatpush1.msra.mxu0 0.0
    %123 = vmatprep.subr.mxu0 0.0
    %124 = vmatpush1.msra.mxu0 0.0
    %125 = vmatprep.subr.mxu0 0.0
    %126 = vmatpush1.msra.mxu0 0.0
    %127 = vmatprep.subr.mxu0 0.0
    %128 = vmatpush1.msra.mxu0 0.0
    %129 = vmatprep.subr.mxu0 0.0
    %130 = vmatpush1.msra.mxu0 0.0
    %131 = vmatprep.subr.mxu0 0.0
    %132 = vmatpush1.msra.mxu0 0.0
    %133 = vmatprep.subr.mxu0 0.0
    %134 = vmatpush1.msra.mxu0 0.0
    %135 = vmatprep.subr.mxu0 0.0
    %136 = vmatpush1.msra.mxu0 0.0
    %137 = vmatprep.subr.mxu0 0.0
    %138 = vmatpush1.msra.mxu0 0.0
    %139 = vmatprep.subr.mxu0 0.0
    %140 = vmatpush1.msra.mxu0 0.0
    %141 = vmatprep.subr.mxu0 0.0
    %142 = vmatpush1.msra.mxu0 0.0
    %143 = vmatprep.subr.mxu0 0.0
    %144 = vmatpush1.msra.mxu0 0.0
    %145 = vmatprep.subr.mxu0 0.0
    %146 = vmatpush1.msra.mxu0 0.0
    %147 = vmatprep.subr.mxu0 0.0
    %148 = vmatpush1.msra.mxu0 0.0
    %149 = vmatprep.subr.mxu0 0.0
    %150 = vmatpush1.msra.mxu0 0.0
    %151 = vmatprep.subr.mxu0 0.0
    %152 = vmatpush1.msra.mxu0 0.0
    %153 = vmatprep.subr.mxu0 0.0
    %154 = vmatpush1.msra.mxu0 0.0
    %155 = vmatprep.subr.mxu0 0.0
    %156 = vmatpush1.msra.mxu0 0.0
    %157 = vmatprep.subr.mxu0 0.0
    %158 = vmatpush1.msra.mxu0 0.0
    %159 = vmatprep.subr.mxu0 0.0
    %160 = vmatpush1.msra.mxu0 0.0
    %161 = vmatprep.subr.mxu0 0.0
    %162 = vmatpush1.msra.mxu0 0.0
    %163 = vmatprep.subr.mxu0 0.0
    %164 = vmatpush1.msra.mxu0 0.0
    %165 = vmatprep.subr.mxu0 0.0
    %166 = vmatpush1.msra.mxu0 0.0
    %167 = vmatprep.subr.mxu0 0.0
    %168 = vmatpush1.msra.mxu0 0.0
    %169 = vmatprep.subr.mxu0 0.0
    %170 = vmatpush1.msra.mxu0 0.0
    %171 = vmatprep.mubr.f32.mxu0 0.0
    %172 = vmatmul.mubr.f32.gmra.mrb[0].mxu0 %v102
    %v173 = vpop.f32.mrb[0].mxu0
    %v174 = vadd.f32 %v98, %v173
    %v175 = vpop.f32.mrb[0].mxu0
    %176 = vmatprep.mubr.f32.mxu0 0.0
    %177 = vmatmul.mubr.f32.gmra.mrb[0].mxu0 %v105
    %v178 = vpop.f32.mrb[0].mxu0
    %v179 = vadd.f32 %v98, %v178
    %v180 = vpop.f32.mrb[0].mxu0
    %181 = vdwg.mxu0
    %v182 = vand.u32 2147483647, %v174
    %v183 = vand.u32 2147483647, %v179
    %v184 = vsub.f32 0.0, %v182
    %v185 = vsub.f32 0.0, %v183
    %v186 = vmul.f32 %v184, 1.442695
    %v187 = vpow.pop %v186
    %v188 = vmul.f32 %v185, 1.442695
    %v189 = vpow.pop %v188
    %v190 = vadd.f32 %v187, 1.0
    %v191 = vlog2.pop %v190
    %v192 = vmul.f32 %v191, 0.6931472
    %v193 = vmul.f32 -0.5, %v187
    %v194 = vadd.f32 %v193, 1.0
    %v195 = vmul.f32 %v194, %v187
    %v196 = vand.u32 2147483647, %v187
    %vm197 = vcmp.lt.f32.partialorder %v196, 0.0004427343
    %v198 = vsel %vm197, %v195, %v192
    %v199 = vadd.f32 %v189, 1.0
    %v200 = vlog2.pop %v199
    %v201 = vmul.f32 %v200, 0.6931472
    %v202 = vmul.f32 -0.5, %v189
    %v203 = vadd.f32 %v202, 1.0
    %v204 = vmul.f32 %v203, %v189
    %v205 = vand.u32 2147483647, %v189
    %vm206 = vcmp.lt.f32.partialorder %v205, 0.0004427343
    %v207 = vsel %vm206, %v204, %v201
    %v208 = vmax.f32 %v174, 0.0
    %v209 = vmax.f32 %v179, 0.0
    %v210 = vadd.f32 %v198, %v208
    %v211 = vadd.f32 %v207, %v209
    %v212 = vld [vmem:[#allocation5] sm:$0xff]
    %v213 = vld [vmem:[#allocation5 + $0x8] sm:$0xff]
    %216 = vrot.lane.b32.xlu0 %v212, 16
    %v217 = vpop.permute.xlu0 %216
    %218 = vrot.lane.b32.xlu0 %v213, 16
    %v219 = vpop.permute.xlu0 %218
    %v222 = vmul.f32 %v210, %v217
    %v223 = vmul.f32 %v211, %v219
    %226 = vrot.lane.b32.xlu0 %v222, 112
    %v227 = vpop.permute.xlu0 %226
    %228 = vrot.lane.b32.xlu0 %v223, 112
    %v229 = vpop.permute.xlu0 %228
    %v232 = vadd.f32 %v174, %v227
    %v233 = vadd.f32 %v179, %v229
    %v234 = vld [vmem:[%s5] sm:$0x1]
    %v236 = vlaneseq
    %v237 = vshrl.u32 %v236, 7
    %v238 = vsub.s32 0, %v237
    %v239 = vrot.slane %v234, %v238
    %vm241 = vcmask 130048
    %v243 = vsel %vm241, %v232, 0
    %v246 = vsel %vm241, %v233, 0
    %248 = vmatprep.subr.mxu0 0.0
    %249 = vmatpush1.msra.mxu0 %v91
    %250 = vmatprep.subr.mxu0 0.0
    %251 = vmatpush1.msra.mxu0 %v92
    %252 = vmatprep.subr.mxu0 0.0
    %253 = vmatpush1.msra.mxu0 0.0
    %254 = vmatprep.subr.mxu0 0.0
    %255 = vmatpush1.msra.mxu0 0.0
    %256 = vmatprep.subr.mxu0 0.0
    %257 = vmatpush1.msra.mxu0 0.0
    %258 = vmatprep.subr.mxu0 0.0
    %259 = vmatpush1.msra.mxu0 0.0
    %260 = vmatprep.subr.mxu0 0.0
    %261 = vmatpush1.msra.mxu0 0.0
    %262 = vmatprep.subr.mxu0 0.0
    %263 = vmatpush1.msra.mxu0 0.0
    %264 = vmatprep.subr.mxu0 0.0
    %265 = vmatpush1.msra.mxu0 0.0
    %266 = vmatprep.subr.mxu0 0.0
    %267 = vmatpush1.msra.mxu0 0.0
    %268 = vmatprep.subr.mxu0 0.0
    %269 = vmatpush1.msra.mxu0 0.0
    %270 = vmatprep.subr.mxu0 0.0
    %271 = vmatpush1.msra.mxu0 0.0
    %272 = vmatprep.subr.mxu0 0.0
    %273 = vmatpush1.msra.mxu0 0.0
    %274 = vmatprep.subr.mxu0 0.0
    %275 = vmatpush1.msra.mxu0 0.0
    %276 = vmatprep.subr.mxu0 0.0
    %277 = vmatpush1.msra.mxu0 0.0
    %278 = vmatprep.subr.mxu0 0.0
    %279 = vmatpush1.msra.mxu0 0.0
    %280 = vmatprep.subr.mxu0 0.0
    %281 = vmatpush1.msra.mxu0 0.0
    %282 = vmatprep.subr.mxu0 0.0
    %283 = vmatpush1.msra.mxu0 0.0
    %284 = vmatprep.subr.mxu0 0.0
    %285 = vmatpush1.msra.mxu0 0.0
    %286 = vmatprep.subr.mxu0 0.0
    %287 = vmatpush1.msra.mxu0 0.0
    %288 = vmatprep.subr.mxu0 0.0
    %289 = vmatpush1.msra.mxu0 0.0
    %290 = vmatprep.subr.mxu0 0.0
    %291 = vmatpush1.msra.mxu0 0.0
    %292 = vmatprep.subr.mxu0 0.0
    %293 = vmatpush1.msra.mxu0 0.0
    %294 = vmatprep.subr.mxu0 0.0
    %295 = vmatpush1.msra.mxu0 0.0
    %296 = vmatprep.subr.mxu0 0.0
    %297 = vmatpush1.msra.mxu0 0.0
    %298 = vmatprep.subr.mxu0 0.0
    %299 = vmatpush1.msra.mxu0 0.0
    %300 = vmatprep.subr.mxu0 0.0
    %301 = vmatpush1.msra.mxu0 0.0
    %302 = vmatprep.subr.mxu0 0.0
    %303 = vmatpush1.msra.mxu0 0.0
    %304 = vmatprep.subr.mxu0 0.0
    %305 = vmatpush1.msra.mxu0 0.0
    %306 = vmatprep.subr.mxu0 0.0
    %307 = vmatpush1.msra.mxu0 0.0
    %308 = vmatprep.subr.mxu0 0.0
    %309 = vmatpush1.msra.mxu0 0.0
    %310 = vmatprep.subr.mxu0 0.0
    %311 = vmatpush1.msra.mxu0 0.0
    %312 = vmatprep.mubr.f32.mxu0 0.0
    %313 = vmatmul.mubr.f32.gmra.mrb[0].mxu0 %v243
    %v314 = vpop.f32.mrb[0].mxu0
    %v315 = vadd.f32 %v239, %v314
    %v316 = vpop.f32.mrb[0].mxu0
    %317 = vmatprep.mubr.f32.mxu0 0.0
    %318 = vmatmul.mubr.f32.gmra.mrb[0].mxu0 %v246
    %v319 = vpop.f32.mrb[0].mxu0
    %v320 = vadd.f32 %v239, %v319
    %v321 = vpop.f32.mrb[0].mxu0
    %322 = vdwg.mxu0
    %323 = vst.msk [vmem:[#allocation10] sm:$0xff] %vm241, %v174
    %324 = vst.msk [vmem:[#allocation10 + $0x8] sm:$0xff] %vm241, %v179
    %327 = vrot.lane.b32.xlu0 %v210, 112
    %v328 = vpop.permute.xlu0 %327
    %329 = vrot.lane.b32.xlu0 %v211, 112
    %v330 = vpop.permute.xlu0 %329
    %333 = vst.msk [vmem:[#allocation11] sm:$0xff] %vm241, %v328
    %334 = vst.msk [vmem:[#allocation11 + $0x8] sm:$0xff] %vm241, %v330
    %335 = vst.msk [vmem:[#allocation13] sm:$0xff] %vm241, %v232
    %336 = vst.msk [vmem:[#allocation13 + $0x8] sm:$0xff] %vm241, %v233
    %337 = vst.msk [vmem:[#allocation14] sm:$0xff] %vm100, %v315
    %338 = vst.msk [vmem:[#allocation14 + $0x8] sm:$0xff] %vm100, %v320
    // Predicated region
    $region42: #{tpu_custom_call.1} parent=1 // pred_check
      _
    $region43: #{tpu_custom_call.1} parent=1 // pred_check_branch
      %340 = sbr.rel (0) target = $region45
    $region44: #{tpu_custom_call.1} parent=1 // pred_region
      %s342 = ssub.s32 256, 256
      %343 = vsyncadd [#allocation4], %s342
      %s344 = sshll.u32 [#allocation10], 4
      %s345 = int_to_ptr.vmem [resolvable:$true] %s344
      %350 = dma.vmem_to_hbm [thread:$0]  %s345, 256, %s6, [#allocation4], 128, 128, 8
    $region45: #{tpu_custom_call.1} parent=1 // pred_fallthru
      _
    // Predicated region
    $region46: #{tpu_custom_call.1} parent=1 // pred_check
      _
    $region47: #{tpu_custom_call.1} parent=1 // pred_check_branch
      %352 = sbr.rel (0) target = $region49
    $region48: #{tpu_custom_call.1} parent=1 // pred_region
      %s354 = ssub.s32 256, 256
      %355 = vsyncadd [#allocation12], %s354
      %s356 = sshll.u32 [#allocation11], 4
      %s357 = int_to_ptr.vmem [resolvable:$true] %s356
      %362 = dma.vmem_to_hbm [thread:$0]  %s357, 256, %s7, [#allocation12], 128, 128, 8
    $region49: #{tpu_custom_call.1} parent=1 // pred_fallthru
      _
    // Predicated region
    $region50: #{tpu_custom_call.1} parent=1 // pred_check
      _
    $region51: #{tpu_custom_call.1} parent=1 // pred_check_branch
      %364 = sbr.rel (0) target = $region53
    $region52: #{tpu_custom_call.1} parent=1 // pred_region
      %s366 = ssub.s32 256, 256
      %367 = vsyncadd [#allocation12], %s366
      %s368 = sshll.u32 [#allocation13], 4
      %s369 = int_to_ptr.vmem [resolvable:$true] %s368
      %374 = dma.vmem_to_hbm [thread:$0]  %s369, 256, %s8, [#allocation12], 128, 128, 8
    $region53: #{tpu_custom_call.1} parent=1 // pred_fallthru
      _
    // Predicated region
    $region54: #{tpu_custom_call.1} parent=1 // pred_check
      _
    $region55: #{tpu_custom_call.1} parent=1 // pred_check_branch
      %376 = sbr.rel (0) target = $region57
    $region56: #{tpu_custom_call.1} parent=1 // pred_region
      %s378 = ssub.s32 256, 256
      %379 = vsyncadd [#allocation15], %s378
      %s380 = sshll.u32 [#allocation14], 4
      %s381 = int_to_ptr.vmem [resolvable:$true] %s380
      %386 = dma.vmem_to_hbm [thread:$0]  %s381, 256, %s9, [#allocation15], 128, 128, 8
    $region57: #{tpu_custom_call.1} parent=1 // pred_fallthru
      _
    // Predicated region
    $region58: #{tpu_custom_call.1} parent=1 // pred_check
      _
    $region59: #{tpu_custom_call.1} parent=1 // pred_check_branch
      %388 = sbr.rel (0) target = $region61
    $region60: #{tpu_custom_call.1} parent=1 // pred_region
      %389 = dma.done [#allocation4], 256
    $region61: #{tpu_custom_call.1} parent=1 // pred_fallthru
      _
    // Predicated region
    $region62: #{tpu_custom_call.1} parent=1 // pred_check
      _
    $region63: #{tpu_custom_call.1} parent=1 // pred_check_branch
      %391 = sbr.rel (0) target = $region65
    $region64: #{tpu_custom_call.1} parent=1 // pred_region
      %392 = dma.done [#allocation12], 256
    $region65: #{tpu_custom_call.1} parent=1 // pred_fallthru
      _
    // Predicated region
    $region66: #{tpu_custom_call.1} parent=1 // pred_check
      _
    $region67: #{tpu_custom_call.1} parent=1 // pred_check_branch
      %394 = sbr.rel (0) target = $region69
    $region68: #{tpu_custom_call.1} parent=1 // pred_region
      %395 = dma.done [#allocation12], 256
    $region69: #{tpu_custom_call.1} parent=1 // pred_fallthru
      _
    // Predicated region
    $region70: #{tpu_custom_call.1} parent=1 // pred_check
      _
    $region71: #{tpu_custom_call.1} parent=1 // pred_check_branch
      %397 = sbr.rel (0) target = $region73
    $region72: #{tpu_custom_call.1} parent=1 // pred_region
      %398 = dma.done [#allocation15], 256
    $region73: #{tpu_custom_call.1} parent=1 // pred_fallthru
      _
    %399 = vsyncpa [#allocation3], 1
    %400 = vsyncpa [#allocation6], 1
    %401 = vsyncpa [#allocation9], 1
    %402 = vsyncpa [#allocation4], 1
    %403 = vsyncpa [#allocation12], 1
    %404 = vsyncpa [#allocation15], 1

</llo_original>
